<compile_context>
chip_gen: v7x
topology: tpu7x:2x2x1
jax: 0.10.0
libtpu: 0.0.40
codegen_flags: <defaults>
</compile_context>

<pallas_src>
import functools

import jax
import jax.numpy as jnp
from jax.experimental import pallas as pl
from jax.experimental.pallas import tpu as pltpu


def _round_up(x, m):
    return ((x + m - 1) // m) * m


def _spk_adv_kernel(x_ref, w1_ref, w2_ref, o_ref, *, t_valid):
    # x_ref:  (bB, T_pad, E)     f32   input block
    # w1_ref: (E, H_pad)         bf16  W_speaker^T, zero-padded
    # w2_ref: (H_pad, N_pad)     bf16  W_classifier^T, zero-padded
    # o_ref:  (bB, T_pad, N_pad) bf16  softmax(dim=T) probabilities
    bB, t_pad, emb = x_ref.shape
    n_pad = o_ref.shape[-1]

    # In-kernel bf16 cast (VPU work hidden under the DMA pipeline) and a
    # layout-free flatten of (bB, T_pad) into the matmul M dimension.
    x = x_ref[...].astype(w1_ref.dtype).reshape(bB * t_pad, emb)

    # speaker = relu(x @ W_speaker^T)          (bB*T_pad, H_pad), MXU f32 acc
    h = jnp.dot(x, w1_ref[...], preferred_element_type=jnp.float32)
    h = jnp.maximum(h, 0.0).astype(w2_ref.dtype)

    # classifier = speaker @ W_classifier^T    (bB*T_pad, N_pad), MXU f32 acc
    logits = jnp.dot(h, w2_ref[...], preferred_element_type=jnp.float32)
    logits = logits.reshape(bB, t_pad, n_pad)

    # Mask padded T rows (emitted only when T was actually padded — static
    # Python condition) so they do not pollute the softmax sum over dim=1.
    if t_valid != t_pad:
        row = jax.lax.broadcasted_iota(jnp.int32, logits.shape, 1)
        logits = jnp.where(row < t_valid, logits, -1e30)

    # softmax over dim=1 (the T axis); exact reciprocal (NLL-safe downstream).
    m = jnp.max(logits, axis=1, keepdims=True)
    exps = jnp.exp(logits - m)
    s = jnp.sum(exps, axis=1, keepdims=True)
    o_ref[...] = (exps * (1.0 / s)).astype(o_ref.dtype)


def prepare_speaker_adversarial_params(w_speaker, w_classifier, *,
                                       compute_dtype=jnp.bfloat16,
                                       hidden_pad=128, lane_pad=128):
    """Call ONCE at parameter-load time (hoisted out of the forward path).

    w_speaker:    (H, E)  nn.Linear layout
    w_classifier: (N, H)  nn.Linear layout
    Returns (w1_padded (E, H_pad), w2_padded (H_pad, N_pad)) in compute_dtype.
    Zero padding is lossless: relu(0) = 0 and padded N columns are sliced off
    after the kernel.  H rounds to 128 (MXU lane group); N rounds to 128 so the
    output stores are full-width vst.
    """
    H, E = w_speaker.shape
    N, H2 = w_classifier.shape
    assert H2 == H
    H_pad = _round_up(H, hidden_pad)
    N_pad = _round_up(N, lane_pad)
    w1 = jnp.zeros((E, H_pad), compute_dtype)
    w1 = w1.at[:, :H].set(jnp.transpose(w_speaker).astype(compute_dtype))
    w2 = jnp.zeros((H_pad, N_pad), compute_dtype)
    w2 = w2.at[:H, :N].set(jnp.transpose(w_classifier).astype(compute_dtype))
    return w1, w2


def _vmem_capacity_bytes(default=64 * 1024 * 1024):
    """Per-TensorCore VMEM (128 MiB v5e/v6e, 64 MiB v7x); safe fallback."""
    try:
        return int(pltpu.get_tpu_info().vmem_capacity_bytes)
    except Exception:
        return default


def _pick_batch_block(B, t_pad, emb, n_pad, *, in_bytes, out_bytes,
                      budget_bytes):
    """Batch elements per grid step under the double-buffered VMEM budget."""
    per_b = 2 * t_pad * (emb * in_bytes + n_pad * out_bytes)   # 2x: dbl-buffer
    bB = max(1, min(B, budget_bytes // max(per_b, 1)))
    while B % bB:
        bB -= 1
    steps = B // bB
    # If the budget already forces multiple steps, prefer an even step count
    # so v7x's two TensorCores split evenly (harmless on single-TC v5e/v6e).
    # Never force extra steps on a config that fits in a single step.
    if steps > 1 and steps % 2:
        cand = bB - 1
        while cand >= 1 and (B % cand or (B // cand) % 2):
            cand -= 1
        if cand >= max(1, bB // 2):
            bB = cand
    return bB


def speaker_adversarial(embedded_text, w1_padded, w2_padded, n_speakers, *,
                        out_dtype=jnp.bfloat16):
    """embedded_text: (B, T, E) f32; w1_padded: (E, H_pad); w2_padded: (H_pad, N_pad)."""
    B, T, emb = embedded_text.shape
    assert w1_padded.shape[0] == emb
    h_pad = w1_padded.shape[1]
    n_pad = w2_padded.shape[1]

    # Pad T to a sublane multiple so the in-kernel (bB,T,E)->(bB*T,E) reshape
    # is layout-free; padded rows are masked out of the softmax in-kernel.
    t_pad = _round_up(T, 8)
    x = embedded_text
    if t_pad != T:
        x = jnp.pad(x, ((0, 0), (0, t_pad - T), (0, 0)))

    out_bytes = jnp.dtype(out_dtype).itemsize
    weight_bytes = 2 * (w1_padded.size * w1_padded.dtype.itemsize
                        + w2_padded.size * w2_padded.dtype.itemsize)  # dbl-buf
    cap = _vmem_capacity_bytes()
    budget = min(24 << 20, cap // 3) - weight_bytes
    vmem_limit = int(min(cap - (8 << 20), budget + weight_bytes + (16 << 20)))

    bB = _pick_batch_block(B, t_pad, emb, n_pad,
                           in_bytes=x.dtype.itemsize, out_bytes=out_bytes,
                           budget_bytes=max(budget, 1 << 20))
    grid = (B // bB,)

    flops = 2 * B * t_pad * (emb * h_pad + h_pad * n_pad)
    bytes_accessed = int(x.size * x.dtype.itemsize
                         + w1_padded.size * w1_padded.dtype.itemsize
                         + w2_padded.size * w2_padded.dtype.itemsize
                         + B * t_pad * n_pad * out_bytes)

    kernel = functools.partial(_spk_adv_kernel, t_valid=T)

    out_padded = pl.pallas_call(
        kernel,
        out_shape=jax.ShapeDtypeStruct((B, t_pad, n_pad), out_dtype),
        grid_spec=pltpu.PrefetchScalarGridSpec(
            num_scalar_prefetch=0,
            grid=grid,
            in_specs=[
                pl.BlockSpec((bB, t_pad, emb), lambda b: (b, 0, 0)),
                pl.BlockSpec((emb, h_pad), lambda b: (0, 0)),
                pl.BlockSpec((h_pad, n_pad), lambda b: (0, 0)),
            ],
            out_specs=pl.BlockSpec((bB, t_pad, n_pad), lambda b: (b, 0, 0)),
        ),
        compiler_params=pltpu.CompilerParams(
            dimension_semantics=("parallel",),
            vmem_limit_bytes=vmem_limit),
        cost_estimate=pl.CostEstimate(
            flops=int(flops),
            transcendentals=int(B * t_pad * n_pad),
            bytes_accessed=bytes_accessed),
    )(x, w1_padded, w2_padded)

    # Slice off the T and N padding (garbage columns / masked rows).
    return out_padded[:, :T, :n_speakers]


def _reference_f32(embedded_text, w_speaker, w_classifier):
    h = jax.nn.relu(jnp.einsum("bte,he->bth", embedded_text, w_speaker))
    logits = jnp.einsum("bth,nh->btn", h, w_classifier)
    return jax.nn.softmax(logits, axis=1)


def _reference_bf16(embedded_text, w_speaker, w_classifier):
    # Emulates the kernel's precision (bf16 MXU inputs, f32 accumulate).
    xb = embedded_text.astype(jnp.bfloat16)
    w1 = jnp.transpose(w_speaker).astype(jnp.bfloat16)
    w2 = jnp.transpose(w_classifier).astype(jnp.bfloat16)
    h = jnp.einsum("bte,eh->bth", xb, w1, preferred_element_type=jnp.float32)
    h = jnp.maximum(h, 0.0).astype(jnp.bfloat16)
    logits = jnp.einsum("bth,hn->btn", h, w2, preferred_element_type=jnp.float32)
    return jax.nn.softmax(logits, axis=1)


if __name__ == "__main__":
    # Small hp: encoder_embedding_dim=32, speaker_hidden=16, n_speakers=4
    B, T, E, H, N = 2, 8, 32, 16, 4

    key = jax.random.PRNGKey(0)
    kx, kw1, kw2 = jax.random.split(key, 3)

    embedded_text = jax.random.normal(kx, (B, T, E), dtype=jnp.float32)
    # nn.Linear layout: (out_features, in_features)
    w_speaker = jax.random.normal(kw1, (H, E), dtype=jnp.float32) * (1.0 / E ** 0.5)
    w_classifier = jax.random.normal(kw2, (N, H), dtype=jnp.float32) * (1.0 / H ** 0.5)

    # Hoisted out of the per-forward path (parameter-load time).
    w1_p, w2_p = prepare_speaker_adversarial_params(w_speaker, w_classifier)

    out = speaker_adversarial(embedded_text, w1_p, w2_p, N)
    out = jax.block_until_ready(out)
    assert out.shape == (B, T, N)
    out_f32 = out.astype(jnp.float32)

    ref_bf16 = _reference_bf16(embedded_text, w_speaker, w_classifier)
    ref_f32 = _reference_f32(embedded_text, w_speaker, w_classifier)
    # Tight check against a same-precision (bf16 MXU) reference; loose check
    # against full-f32 math (bf16 inputs/weights + bf16 output quantization).
    assert jnp.allclose(out_f32, ref_bf16, atol=1.5e-2, rtol=1.5e-2)
    assert jnp.allclose(out_f32, ref_f32, atol=8e-2, rtol=8e-2)
    # Columns of a dim=1 softmax sum to 1 (up to bf16 output rounding).
    assert jnp.allclose(jnp.sum(out_f32, axis=1), 1.0, atol=1e-2)

    # Second config: T not a multiple of 8 exercises the padded-T softmax mask.
    B2, T2 = 3, 6
    x2 = jax.random.normal(jax.random.PRNGKey(1), (B2, T2, E), dtype=jnp.float32)
    out2 = jax.block_until_ready(speaker_adversarial(x2, w1_p, w2_p, N))
    assert out2.shape == (B2, T2, N)
    out2_f32 = out2.astype(jnp.float32)
    ref2 = _reference_bf16(x2, w_speaker, w_classifier)
    assert jnp.allclose(out2_f32, ref2, atol=1.5e-2, rtol=1.5e-2)
    assert jnp.allclose(jnp.sum(out2_f32, axis=1), 1.0, atol=1e-2)

    print("KERNEL_OK")
</pallas_src>

<mosaic_0001>
module attributes {stable_mosaic.version = 11 : i64} {
  func.func @_spk_adv_kernel(%arg0: i32, %arg1: memref<2x8x32xf32, #tpu.memory_space<vmem>>, %arg2: memref<32x128xbf16, #tpu.memory_space<vmem>>, %arg3: memref<128x128xbf16, #tpu.memory_space<vmem>>, %arg4: memref<2x8x128xbf16, #tpu.memory_space<vmem>>) attributes {dimension_semantics = [#tpu.dimension_semantics<parallel>], iteration_bounds = array<i64: 1>, scalar_prefetch = 0 : i64, scratch_operands = 0 : i64, tpu.core_type = #tpu.core_type<tc>, window_params = [{transform_indices = @transform_0, window_bounds = array<i64: 2, 8, 32>}, {pipeline_mode = #tpu.pipeline_mode<synchronous>, transform_indices = @transform_1, window_bounds = array<i64: 32, 128>}, {pipeline_mode = #tpu.pipeline_mode<synchronous>, transform_indices = @transform_2, window_bounds = array<i64: 128, 128>}, {transform_indices = @transform_3, window_bounds = array<i64: 2, 8, 128>}]} {
    %c0 = arith.constant 0 : index
    %c0_0 = arith.constant 0 : index
    %c0_1 = arith.constant 0 : index
    %0 = vector.load %arg1[%c0, %c0_0, %c0_1] : memref<2x8x32xf32, #tpu.memory_space<vmem>>, vector<2x8x32xf32>
    %1 = arith.truncf %0 : vector<2x8x32xf32> to vector<2x8x32xbf16>
    %2 = vector.shape_cast %1 : vector<2x8x32xbf16> to vector<16x32xbf16>
    %c0_2 = arith.constant 0 : index
    %c0_3 = arith.constant 0 : index
    %3 = vector.load %arg2[%c0_2, %c0_3] : memref<32x128xbf16, #tpu.memory_space<vmem>>, vector<32x128xbf16>
    %cst = arith.constant dense<0.000000e+00> : vector<16x128xf32>
    %4 = tpu.matmul %2, %3, %cst {dimension_numbers = #tpu.dot_dimension_numbers<[1], [0], [0], [1], [0, 0, 1, 1], [], []>} : vector<16x32xbf16>, vector<32x128xbf16>, vector<16x128xf32> -> vector<16x128xf32>
    %cst_4 = arith.constant 0.000000e+00 : f32
    %5 = vector.broadcast %cst_4 : f32 to vector<16x128xf32>
    %6 = arith.maximumf %4, %5 : vector<16x128xf32>
    %7 = arith.truncf %6 : vector<16x128xf32> to vector<16x128xbf16>
    %c0_5 = arith.constant 0 : index
    %c0_6 = arith.constant 0 : index
    %8 = vector.load %arg3[%c0_5, %c0_6] : memref<128x128xbf16, #tpu.memory_space<vmem>>, vector<128x128xbf16>
    %cst_7 = arith.constant dense<0.000000e+00> : vector<16x128xf32>
    %9 = tpu.matmul %7, %8, %cst_7 {dimension_numbers = #tpu.dot_dimension_numbers<[1], [0], [0], [1], [0, 0, 1, 1], [], []>} : vector<16x128xbf16>, vector<128x128xbf16>, vector<16x128xf32> -> vector<16x128xf32>
    %10 = vector.shape_cast %9 : vector<16x128xf32> to vector<2x8x128xf32>
    %cst_8 = arith.constant dense<0xFF800000> : vector<2x128xf32>
    %11 = vector.multi_reduction <maximumf>, %10, %cst_8 [1] : vector<2x8x128xf32> to vector<2x128xf32>
    %12 = vector.shape_cast %11 : vector<2x128xf32> to vector<2x1x128xf32>
    %13 = vector.broadcast %12 : vector<2x1x128xf32> to vector<2x8x128xf32>
    %14 = arith.subf %10, %13 : vector<2x8x128xf32>
    %15 = math.exp %14 : vector<2x8x128xf32>
    %cst_9 = arith.constant dense<0.000000e+00> : vector<2x128xf32>
    %16 = vector.multi_reduction <add>, %15, %cst_9 [1] : vector<2x8x128xf32> to vector<2x128xf32>
    %17 = vector.shape_cast %16 : vector<2x128xf32> to vector<2x1x128xf32>
    %cst_10 = arith.constant 1.000000e+00 : f32
    %18 = vector.broadcast %cst_10 : f32 to vector<2x1x128xf32>
    %19 = arith.divf %18, %17 : vector<2x1x128xf32>
    %20 = vector.broadcast %19 : vector<2x1x128xf32> to vector<2x8x128xf32>
    %21 = arith.mulf %15, %20 : vector<2x8x128xf32>
    %22 = arith.truncf %21 : vector<2x8x128xf32> to vector<2x8x128xbf16>
    %c0_11 = arith.constant 0 : index
    %c0_12 = arith.constant 0 : index
    %c0_13 = arith.constant 0 : index
    %23 = vector.load %arg4[%c0_11, %c0_12, %c0_13] : memref<2x8x128xbf16, #tpu.memory_space<vmem>>, vector<2x8x128xbf16>
    tpu.vector_store %arg4[%c0_11, %c0_12, %c0_13], %22 {strides = array<i32>} : memref<2x8x128xbf16, #tpu.memory_space<vmem>>, vector<2x8x128xbf16>,
    return
  }
  func.func @transform_0(%arg0: i32) -> (i32, i32, i32) {
    %c0_i32 = arith.constant 0 : i32
    %c0_i32_0 = arith.constant 0 : i32
    %c0_i32_1 = arith.constant 0 : i32
    return %arg0, %c0_i32, %c0_i32_0 : i32, i32, i32
  }
  func.func @transform_1(%arg0: i32) -> (i32, i32) {
    %c0_i32 = arith.constant 0 : i32
    %c0_i32_0 = arith.constant 0 : i32
    %c0_i32_1 = arith.constant 0 : i32
    return %c0_i32, %c0_i32_0 : i32, i32
  }
  func.func @transform_2(%arg0: i32) -> (i32, i32) {
    %c0_i32 = arith.constant 0 : i32
    %c0_i32_0 = arith.constant 0 : i32
    %c0_i32_1 = arith.constant 0 : i32
    return %c0_i32, %c0_i32_0 : i32, i32
  }
  func.func @transform_3(%arg0: i32) -> (i32, i32, i32) {
    %c0_i32 = arith.constant 0 : i32
    %c0_i32_0 = arith.constant 0 : i32
    %c0_i32_1 = arith.constant 0 : i32
    return %arg0, %c0_i32, %c0_i32_0 : i32, i32, i32
  }
}

</mosaic_0001>

<llo_original>
// kernel: tpu_custom_call.1
$region0: #{tpu_custom_call.1}
  #allocation0 [shape = 'u32[]', space=smem, size = 0x4, offset = 0x4, fixed_abs, tag = 'smem constant byte address 0x4 - core index']
  #allocation1 [shape = 'u32[144,128]{1,0:T(1,128)}', space=vmem, size = 0x12000, scoped, tag = 'internal scratch']
  %s0 = inlined_call_operand.hbm [shape: f32[2,8,32], index: 0, kind: input, shape index: {}]
  %s1 = inlined_call_operand.hbm [shape: bf16[32,128], index: 1, kind: input, shape index: {}]
  %s2 = inlined_call_operand.hbm [shape: bf16[128,128], index: 2, kind: input, shape index: {}]
  %s3 = inlined_call_operand.hbm [shape: bf16[2,8,128], index: 3, kind: output, shape index: {}]
  %s4 = sld [smem:[#allocation0]]
  $region34: #{tpu_custom_call.1} parent=0
    _
  %s6 = ssub.s32 1, %s4
  %s7 = scalar_select 0, %s6, %s4
  $region1: #{tpu_custom_call.1} parent=0
    #allocation2 [shape = 'u8[8192]{0}', space=vmem, size = 0x2000, scoped, tag = 'input window, operand 0, single buffered']
    #allocation3 [shape = 's32[1]{0}', space=sflag, size = 0x4, scoped, tag = 'scoped memory for tpu_custom_call.1']
    #allocation4 [shape = 's32[1]{0}', space=sflag, size = 0x4, scoped, tag = 'scoped memory for tpu_custom_call.1']
    #allocation5 [shape = 'u8[8192]{0}', space=vmem, size = 0x2000, scoped, tag = 'input window, operand 1, single buffered']
    #allocation6 [shape = 's32[1]{0}', space=sflag, size = 0x4, scoped, tag = 'scoped memory for tpu_custom_call.1']
    #allocation7 [shape = 'u8[32768]{0}', space=vmem, size = 0x8000, scoped, tag = 'input window, operand 2, single buffered']
    #allocation8 [shape = 'u8[4096]{0}', space=vmem, size = 0x1000, scoped, tag = 'output window, operand 0, single buffered']
    %8 = vsyncpa [#allocation3], 0
    %9 = vsyncpa [#allocation6], 0
    %10 = vsyncpa [#allocation4], 0
    // Predicated region
    $region2: #{tpu_custom_call.1} parent=1 // pred_check
      _
    $region3: #{tpu_custom_call.1} parent=1 // pred_check_branch
      %12 = sbr.rel (0) target = $region5
    $region4: #{tpu_custom_call.1} parent=1 // pred_region
      %s14 = ssub.s32 256, 256
      %15 = vsyncadd [#allocation3], %s14
      %s16 = sshll.u32 [#allocation2], 4
      %s17 = int_to_ptr.vmem [resolvable:$true] %s16
      %22 = dma.hbm_to_vmem [thread:$0]  %s0, 256, %s17, [#allocation3], 128, 128, 8
    $region5: #{tpu_custom_call.1} parent=1 // pred_fallthru
      _
    // Predicated region
    $region6: #{tpu_custom_call.1} parent=1 // pred_check
      _
    $region7: #{tpu_custom_call.1} parent=1 // pred_check_branch
      %24 = sbr.rel (0) target = $region9
    $region8: #{tpu_custom_call.1} parent=1 // pred_region
      %s26 = ssub.s32 256, 256
      %27 = vsyncadd [#allocation6], %s26
      %s28 = sshll.u32 [#allocation5], 4
      %s29 = int_to_ptr.vmem [resolvable:$true] %s28
      %34 = dma.hbm_to_vmem [thread:$0]  %s1, 256, %s29, [#allocation6], 64, 64, 4
    $region9: #{tpu_custom_call.1} parent=1 // pred_fallthru
      _
    // Predicated region
    $region10: #{tpu_custom_call.1} parent=1 // pred_check
      _
    $region11: #{tpu_custom_call.1} parent=1 // pred_check_branch
      %36 = sbr.rel (0) target = $region13
    $region12: #{tpu_custom_call.1} parent=1 // pred_region
      %s38 = ssub.s32 1024, 1024
      %39 = vsyncadd [#allocation6], %s38
      %s40 = sshll.u32 [#allocation7], 4
      %s41 = int_to_ptr.vmem [resolvable:$true] %s40
      %46 = dma.hbm_to_vmem [thread:$0]  %s2, 1024, %s41, [#allocation6], 64, 64, 4
    $region13: #{tpu_custom_call.1} parent=1 // pred_fallthru
      _
    // Predicated region
    $region14: #{tpu_custom_call.1} parent=1 // pred_check
      _
    $region15: #{tpu_custom_call.1} parent=1 // pred_check_branch
      %48 = sbr.rel (0) target = $region17
    $region16: #{tpu_custom_call.1} parent=1 // pred_region
      %49 = dma.done [#allocation3], 256
    $region17: #{tpu_custom_call.1} parent=1 // pred_fallthru
      _
    // Predicated region
    $region18: #{tpu_custom_call.1} parent=1 // pred_check
      _
    $region19: #{tpu_custom_call.1} parent=1 // pred_check_branch
      %51 = sbr.rel (0) target = $region21
    $region20: #{tpu_custom_call.1} parent=1 // pred_region
      %52 = dma.done [#allocation6], 256
    $region21: #{tpu_custom_call.1} parent=1 // pred_fallthru
      _
    // Predicated region
    $region22: #{tpu_custom_call.1} parent=1 // pred_check
      _
    $region23: #{tpu_custom_call.1} parent=1 // pred_check_branch
      %54 = sbr.rel (0) target = $region25
    $region24: #{tpu_custom_call.1} parent=1 // pred_region
      %55 = dma.done [#allocation6], 1024
    $region25: #{tpu_custom_call.1} parent=1 // pred_fallthru
      _
    %v57 = vld [vmem:[#allocation2] sm:$0xff]
    %v58 = vld [vmem:[#allocation2 + $0x8] sm:$0xff]
    %v59 = vpack.c.bf16 %v57, %v57
    %v60 = vpack.c.bf16 %v58, %v58
    %v61 = vld [vmem:[#allocation5] sm:$0xf]
    %v62 = vld [vmem:[#allocation5 + $0x4] sm:$0xf]
    %v63 = vld [vmem:[#allocation5 + $0x8] sm:$0xf]
    %v64 = vld [vmem:[#allocation5 + $0xc] sm:$0xf]
    %v67 = vunpack.c.l.b16 %v59
    %v68 = vunpack.c.l.b16 %v60
    %v69 = vpack.c.b16 %v68, %v67
    %v74 = vunpack.c.l.b16 %v61
    %v75 = vunpack.c.l.b16 %v62
    %v76 = vunpack.c.l.b16 %v63
    %v77 = vunpack.c.l.b16 %v64
    %v78 = vpack.c.b16 %v75, %v74
    %v79 = vpack.c.b16 %v77, %v76
    %vm82 = vcmask 261120
    %v84 = vsel %vm82, %v69, 0
    %86 = vmatprep.subr.bf16.mxu0 0
    %87 = vmatpush1.bf16.msra.mxu0 %v78
    %88 = vmatprep.subr.bf16.mxu0 0
    %89 = vmatpush1.bf16.msra.mxu0 %v79
    %90 = vmatprep.subr.bf16.mxu0 0
    %91 = vmatpush1.bf16.msra.mxu0 0
    %92 = vmatprep.subr.bf16.mxu0 0
    %93 = vmatpush1.bf16.msra.mxu0 0
    %94 = vmatprep.subr.bf16.mxu0 0
    %95 = vmatpush1.bf16.msra.mxu0 0
    %96 = vmatprep.subr.bf16.mxu0 0
    %97 = vmatpush1.bf16.msra.mxu0 0
    %98 = vmatprep.subr.bf16.mxu0 0
    %99 = vmatpush1.bf16.msra.mxu0 0
    %100 = vmatprep.subr.bf16.mxu0 0
    %101 = vmatpush1.bf16.msra.mxu0 0
    %102 = vmatprep.subr.bf16.mxu0 0
    %103 = vmatpush1.bf16.msra.mxu0 0
    %104 = vmatprep.subr.bf16.mxu0 0
    %105 = vmatpush1.bf16.msra.mxu0 0
    %106 = vmatprep.subr.bf16.mxu0 0
    %107 = vmatpush1.bf16.msra.mxu0 0
    %108 = vmatprep.subr.bf16.mxu0 0
    %109 = vmatpush1.bf16.msra.mxu0 0
    %110 = vmatprep.subr.bf16.mxu0 0
    %111 = vmatpush1.bf16.msra.mxu0 0
    %112 = vmatprep.subr.bf16.mxu0 0
    %113 = vmatpush1.bf16.msra.mxu0 0
    %114 = vmatprep.subr.bf16.mxu0 0
    %115 = vmatpush1.bf16.msra.mxu0 0
    %116 = vmatprep.subr.bf16.mxu0 0
    %117 = vmatpush1.bf16.msra.mxu0 0
    %118 = vmatprep.mubr.bf16.mxu0 0
    %119 = vmatmul.mubr.bf16.gmra.mrb[0].mxu0 %v84
    %v120 = vpop.f32.mrb[0].mxu0
    %v121 = vadd.f32 0.0, %v120
    %v122 = vpop.f32.mrb[0].mxu0
    %v123 = vpop.f32.mrb[0].mxu0
    %v124 = vadd.f32 0.0, %v123
    %v125 = vpop.f32.mrb[0].mxu0
    %126 = vdwg.mxu0
    %v127 = vmax.f32 %v121, 0.0
    %v128 = vmax.f32 %v124, 0.0
    %v129 = vpack.c.bf16 %v128, %v127
    %v130 = vld [vmem:[#allocation7] sm:$0xf]
    %v131 = vld [vmem:[#allocation7 + $0x4] sm:$0xf]
    %v132 = vld [vmem:[#allocation7 + $0x8] sm:$0xf]
    %v133 = vld [vmem:[#allocation7 + $0xc] sm:$0xf]
    %v134 = vld [vmem:[#allocation7 + $0x10] sm:$0xf]
    %v135 = vld [vmem:[#allocation7 + $0x14] sm:$0xf]
    %v136 = vld [vmem:[#allocation7 + $0x18] sm:$0xf]
    %v137 = vld [vmem:[#allocation7 + $0x1c] sm:$0xf]
    %v138 = vld [vmem:[#allocation7 + $0x20] sm:$0xf]
    %v139 = vld [vmem:[#allocation7 + $0x24] sm:$0xf]
    %v140 = vld [vmem:[#allocation7 + $0x28] sm:$0xf]
    %v141 = vld [vmem:[#allocation7 + $0x2c] sm:$0xf]
    %v142 = vld [vmem:[#allocation7 + $0x30] sm:$0xf]
    %v143 = vld [vmem:[#allocation7 + $0x34] sm:$0xf]
    %v144 = vld [vmem:[#allocation7 + $0x38] sm:$0xf]
    %v145 = vld [vmem:[#allocation7 + $0x3c] sm:$0xf]
    %v162 = vunpack.c.l.b16 %v130
    %v163 = vunpack.c.l.b16 %v131
    %v164 = vunpack.c.l.b16 %v132
    %v165 = vunpack.c.l.b16 %v133
    %v166 = vunpack.c.l.b16 %v134
    %v167 = vunpack.c.l.b16 %v135
    %v168 = vunpack.c.l.b16 %v136
    %v169 = vunpack.c.l.b16 %v137
    %v170 = vunpack.c.l.b16 %v138
    %v171 = vunpack.c.l.b16 %v139
    %v172 = vunpack.c.l.b16 %v140
    %v173 = vunpack.c.l.b16 %v141
    %v174 = vunpack.c.l.b16 %v142
    %v175 = vunpack.c.l.b16 %v143
    %v176 = vunpack.c.l.b16 %v144
    %v177 = vunpack.c.l.b16 %v145
    %v178 = vpack.c.b16 %v163, %v162
    %v179 = vpack.c.b16 %v165, %v164
    %v180 = vpack.c.b16 %v167, %v166
    %v181 = vpack.c.b16 %v169, %v168
    %v182 = vpack.c.b16 %v171, %v170
    %v183 = vpack.c.b16 %v173, %v172
    %v184 = vpack.c.b16 %v175, %v174
    %v185 = vpack.c.b16 %v177, %v176
    %194 = vmatprep.subr.bf16.mxu0 0
    %195 = vmatpush1.bf16.msra.mxu0 %v178
    %196 = vmatprep.subr.bf16.mxu0 0
    %197 = vmatpush1.bf16.msra.mxu0 %v179
    %198 = vmatprep.subr.bf16.mxu0 0
    %199 = vmatpush1.bf16.msra.mxu0 %v180
    %200 = vmatprep.subr.bf16.mxu0 0
    %201 = vmatpush1.bf16.msra.mxu0 %v181
    %202 = vmatprep.subr.bf16.mxu0 0
    %203 = vmatpush1.bf16.msra.mxu0 %v182
    %204 = vmatprep.subr.bf16.mxu0 0
    %205 = vmatpush1.bf16.msra.mxu0 %v183
    %206 = vmatprep.subr.bf16.mxu0 0
    %207 = vmatpush1.bf16.msra.mxu0 %v184
    %208 = vmatprep.subr.bf16.mxu0 0
    %209 = vmatpush1.bf16.msra.mxu0 %v185
    %210 = vmatprep.subr.bf16.mxu0 0
    %211 = vmatpush1.bf16.msra.mxu0 0
    %212 = vmatprep.subr.bf16.mxu0 0
    %213 = vmatpush1.bf16.msra.mxu0 0
    %214 = vmatprep.subr.bf16.mxu0 0
    %215 = vmatpush1.bf16.msra.mxu0 0
    %216 = vmatprep.subr.bf16.mxu0 0
    %217 = vmatpush1.bf16.msra.mxu0 0
    %218 = vmatprep.subr.bf16.mxu0 0
    %219 = vmatpush1.bf16.msra.mxu0 0
    %220 = vmatprep.subr.bf16.mxu0 0
    %221 = vmatpush1.bf16.msra.mxu0 0
    %222 = vmatprep.subr.bf16.mxu0 0
    %223 = vmatpush1.bf16.msra.mxu0 0
    %224 = vmatprep.subr.bf16.mxu0 0
    %225 = vmatpush1.bf16.msra.mxu0 0
    %226 = vmatprep.mubr.bf16.mxu0 0
    %227 = vmatmul.mubr.bf16.gmra.mrb[0].mxu0 %v129
    %v228 = vpop.f32.mrb[0].mxu0
    %v229 = vadd.f32 0.0, %v228
    %v230 = vpop.f32.mrb[0].mxu0
    %v231 = vpop.f32.mrb[0].mxu0
    %v232 = vadd.f32 0.0, %v231
    %v233 = vpop.f32.mrb[0].mxu0
    %234 = vdwg.mxu0
    %v235 = vrot.slane %v229, 4
    %v236 = vmax.f32 %v229, %v235
    %v237 = vrot.slane %v236, 2
    %v238 = vmax.f32 %v236, %v237
    %v239 = vrot.slane %v238, 1
    %v240 = vmax.f32 %v238, %v239
    %v241 = vrot.slane %v232, 4
    %v242 = vmax.f32 %v232, %v241
    %v243 = vrot.slane %v242, 2
    %v244 = vmax.f32 %v242, %v243
    %v245 = vrot.slane %v244, 1
    %v246 = vmax.f32 %v244, %v245
    %v247 = vsub.f32 %v229, %v240
    %v248 = vsub.f32 %v232, %v246
    %v249 = vmul.f32 %v247, 1.442695
    %v250 = vpow.pop %v249
    %v251 = vmul.f32 %v248, 1.442695
    %v252 = vpow.pop %v251
    %v253 = vrot.slane %v250, 4
    %v254 = vadd.f32 %v250, %v253
    %v255 = vrot.slane %v254, 2
    %v256 = vadd.f32 %v254, %v255
    %v257 = vrot.slane %v256, 1
    %v258 = vadd.f32 %v256, %v257
    %v259 = vrot.slane %v252, 4
    %v260 = vadd.f32 %v252, %v259
    %v261 = vrot.slane %v260, 2
    %v262 = vadd.f32 %v260, %v261
    %v263 = vrot.slane %v262, 1
    %v264 = vadd.f32 %v262, %v263
    %v265 = vrcp.pop %v258
    %v266 = vmul.f32 1.0, %v265
    %v267 = vrcp.pop %v264
    %v268 = vmul.f32 1.0, %v267
    %v269 = vmul.f32 %v250, %v266
    %v270 = vmul.f32 %v252, %v268
    %v271 = vpack.c.bf16 %v269, %v269
    %v272 = vpack.c.bf16 %v270, %v270
    %273 = vst [vmem:[#allocation8] sm:$0xf] %v271
    %274 = vst [vmem:[#allocation8 + $0x4] sm:$0xf] %v272
    // Predicated region
    $region26: #{tpu_custom_call.1} parent=1 // pred_check
      _
    $region27: #{tpu_custom_call.1} parent=1 // pred_check_branch
      %276 = sbr.rel (0) target = $region29
    $region28: #{tpu_custom_call.1} parent=1 // pred_region
      %s278 = ssub.s32 128, 128
      %279 = vsyncadd [#allocation4], %s278
      %s280 = sshll.u32 [#allocation8], 4
      %s281 = int_to_ptr.vmem [resolvable:$true] %s280
      %286 = dma.vmem_to_hbm [thread:$0]  %s281, 128, %s3, [#allocation4], 64, 64, 4
    $region29: #{tpu_custom_call.1} parent=1 // pred_fallthru
      _
    // Predicated region
    $region30: #{tpu_custom_call.1} parent=1 // pred_check
      _
    $region31: #{tpu_custom_call.1} parent=1 // pred_check_branch
      %288 = sbr.rel (0) target = $region33
    $region32: #{tpu_custom_call.1} parent=1 // pred_region
      %289 = dma.done [#allocation4], 128
    $region33: #{tpu_custom_call.1} parent=1 // pred_fallthru
      _
    %290 = vsyncpa [#allocation3], 1
    %291 = vsyncpa [#allocation6], 1
    %292 = vsyncpa [#allocation4], 1

</llo_original>
